<compile_context>
chip_gen: v7x
topology: tpu7x:2x2x1
jax: 0.10.0
libtpu: 0.0.40
codegen_flags: <defaults>
</compile_context>

<pallas_src>
import jax
import jax.numpy as jnp
from jax import lax
from jax.experimental import pallas as pl
from jax.experimental.pallas import tpu as pltpu


def _linear_kernel(z_ref, w_ref, b_ref, o_ref):
    # z_ref: (TM, D) f32   w_ref: (C_pad, D) f32 (PyTorch layout)
    # b_ref: (1, C_pad) f32   o_ref: (TM, C_pad) f32
    z_bf = z_ref[...].astype(jnp.bfloat16)
    w_bf = w_ref[...].astype(jnp.bfloat16)
    # y = z @ W.T  done as dot_general contracting both operands' dim 1,
    # so the (C, D) weight never needs a layout shuffle.
    acc = lax.dot_general(
        z_bf, w_bf,
        dimension_numbers=(((1,), (1,)), ((), ())),
        preferred_element_type=jnp.float32,
    )
    o_ref[...] = (acc + b_ref[...]).astype(o_ref.dtype)


def label_decoder_forward(z, weight, bias, *, block_rows=512):
    """y = z @ weight.T + bias   (torch.nn.Linear semantics).

    z:      (B, latent_dim) float32
    weight: (num_classes, latent_dim) float32   (native PyTorch layout)
    bias:   (num_classes,) float32
    returns (B, num_classes) float32
    """
    B, D = z.shape
    C = weight.shape[0]

    # Zero-pad the class dimension to a lane-dense multiple of 128.
    C_pad = max(128, pl.cdiv(C, 128) * 128)
    w_p = jnp.zeros((C_pad, D), weight.dtype).at[:C, :].set(weight)
    b_p = jnp.zeros((1, C_pad), bias.dtype).at[0, :C].set(bias)

    # Batch tile: big enough to pipeline well, small enough for v7x VMEM.
    TM = min(block_rows, B)
    grid = (pl.cdiv(B, TM),)

    out = pl.pallas_call(
        _linear_kernel,
        out_shape=jax.ShapeDtypeStruct((B, C_pad), z.dtype),
        grid_spec=pl.GridSpec(
            grid=grid,
            in_specs=[
                pl.BlockSpec((TM, D), lambda i: (i, 0)),        # z tile
                pl.BlockSpec((C_pad, D), lambda i: (0, 0)),     # weight (resident)
                pl.BlockSpec((1, C_pad), lambda i: (0, 0)),     # bias (resident)
            ],
            out_specs=pl.BlockSpec((TM, C_pad), lambda i: (i, 0)),
        ),
        compiler_params=pltpu.CompilerParams(
            dimension_semantics=("parallel",),
            vmem_limit_bytes=32 * 1024 * 1024,
        ),
    )(z, w_p, b_p)

    return out[:, :C]


if __name__ == "__main__":
    latent_dim = 128
    num_classes = 10
    batch = 2

    key = jax.random.PRNGKey(0)
    k_z, k_w, k_b = jax.random.split(key, 3)

    # Deterministic synthetic parameters (shapes match nn.Linear(128, 10)).
    bound = 1.0 / (latent_dim ** 0.5)
    weight = jax.random.uniform(k_w, (num_classes, latent_dim),
                                jnp.float32, -bound, bound)
    bias = jax.random.uniform(k_b, (num_classes,), jnp.float32, -bound, bound)

    z = jax.random.normal(k_z, (batch, latent_dim), jnp.float32)

    y = label_decoder_forward(z, weight, bias)
    y = jax.block_until_ready(y)

    # Reference (same math as torch.nn.Linear). Tolerance loosened for the
    # bf16-operand / f32-accumulate MXU path.
    y_ref = z @ weight.T + bias
    assert y.shape == (batch, num_classes)
    assert jnp.allclose(y, y_ref, atol=5e-2, rtol=5e-2)

    print("KERNEL_OK")
</pallas_src>

<mosaic_0001>
module attributes {stable_mosaic.version = 11 : i64} {
  func.func @_linear_kernel(%arg0: i32, %arg1: memref<2x128xf32, #tpu.memory_space<vmem>>, %arg2: memref<128x128xf32, #tpu.memory_space<vmem>>, %arg3: memref<1x128xf32, #tpu.memory_space<vmem>>, %arg4: memref<2x128xf32, #tpu.memory_space<vmem>>) attributes {dimension_semantics = [#tpu.dimension_semantics<parallel>], iteration_bounds = array<i64: 1>, scalar_prefetch = 0 : i64, scratch_operands = 0 : i64, tpu.core_type = #tpu.core_type<tc>, window_params = [{transform_indices = @transform_0, window_bounds = array<i64: 2, 128>}, {pipeline_mode = #tpu.pipeline_mode<synchronous>, transform_indices = @transform_1, window_bounds = array<i64: 128, 128>}, {pipeline_mode = #tpu.pipeline_mode<synchronous>, transform_indices = @transform_2, window_bounds = array<i64: 1, 128>}, {transform_indices = @transform_3, window_bounds = array<i64: 2, 128>}]} {
    %c0 = arith.constant 0 : index
    %c0_0 = arith.constant 0 : index
    %0 = vector.load %arg1[%c0, %c0_0] : memref<2x128xf32, #tpu.memory_space<vmem>>, vector<2x128xf32>
    %1 = arith.truncf %0 : vector<2x128xf32> to vector<2x128xbf16>
    %c0_1 = arith.constant 0 : index
    %c0_2 = arith.constant 0 : index
    %2 = vector.load %arg2[%c0_1, %c0_2] : memref<128x128xf32, #tpu.memory_space<vmem>>, vector<128x128xf32>
    %3 = arith.truncf %2 : vector<128x128xf32> to vector<128x128xbf16>
    %cst = arith.constant dense<0.000000e+00> : vector<2x128xf32>
    %4 = tpu.matmul %1, %3, %cst {dimension_numbers = #tpu.dot_dimension_numbers<[1], [1], [0], [0], [0, 0, 1, 0], [], []>} : vector<2x128xbf16>, vector<128x128xbf16>, vector<2x128xf32> -> vector<2x128xf32>
    %c0_3 = arith.constant 0 : index
    %c0_4 = arith.constant 0 : index
    %5 = vector.load %arg3[%c0_3, %c0_4] : memref<1x128xf32, #tpu.memory_space<vmem>>, vector<1x128xf32>
    %6 = vector.broadcast %5 : vector<1x128xf32> to vector<2x128xf32>
    %7 = arith.addf %4, %6 : vector<2x128xf32>
    %c0_5 = arith.constant 0 : index
    %c0_6 = arith.constant 0 : index
    %8 = vector.load %arg4[%c0_5, %c0_6] : memref<2x128xf32, #tpu.memory_space<vmem>>, vector<2x128xf32>
    tpu.vector_store %arg4[%c0_5, %c0_6], %7 {strides = array<i32>} : memref<2x128xf32, #tpu.memory_space<vmem>>, vector<2x128xf32>,
    return
  }
  func.func @transform_0(%arg0: i32) -> (i32, i32) {
    %c0_i32 = arith.constant 0 : i32
    %c0_i32_0 = arith.constant 0 : i32
    return %arg0, %c0_i32 : i32, i32
  }
  func.func @transform_1(%arg0: i32) -> (i32, i32) {
    %c0_i32 = arith.constant 0 : i32
    %c0_i32_0 = arith.constant 0 : i32
    %c0_i32_1 = arith.constant 0 : i32
    return %c0_i32, %c0_i32_0 : i32, i32
  }
  func.func @transform_2(%arg0: i32) -> (i32, i32) {
    %c0_i32 = arith.constant 0 : i32
    %c0_i32_0 = arith.constant 0 : i32
    %c0_i32_1 = arith.constant 0 : i32
    return %c0_i32, %c0_i32_0 : i32, i32
  }
  func.func @transform_3(%arg0: i32) -> (i32, i32) {
    %c0_i32 = arith.constant 0 : i32
    %c0_i32_0 = arith.constant 0 : i32
    return %arg0, %c0_i32 : i32, i32
  }
}

</mosaic_0001>

<llo_original>
// kernel: tpu_custom_call.1
$region0: #{tpu_custom_call.1}
  #allocation0 [shape = 'u32[]', space=smem, size = 0x4, offset = 0x4, fixed_abs, tag = 'smem constant byte address 0x4 - core index']
  #allocation1 [shape = 'u32[144,128]{1,0:T(1,128)}', space=vmem, size = 0x12000, scoped, tag = 'internal scratch']
  %s0 = inlined_call_operand.hbm [shape: f32[2,128], index: 0, kind: input, shape index: {}]
  %s1 = inlined_call_operand.hbm [shape: f32[128,128], index: 1, kind: input, shape index: {}]
  %s2 = inlined_call_operand.vmem [shape: f32[1,128], index: 2, kind: input, shape index: {}]
  %s3 = inlined_call_operand.hbm [shape: f32[2,128], index: 3, kind: output, shape index: {}]
  %s4 = sld [smem:[#allocation0]]
  $region30: #{tpu_custom_call.1} parent=0
    _
  %s6 = ssub.s32 1, %s4
  %s7 = scalar_select 0, %s6, %s4
  $region1: #{tpu_custom_call.1} parent=0
    #allocation2 [shape = 'u8[1024]{0}', space=vmem, size = 0x400, scoped, tag = 'input window, operand 0, single buffered']
    #allocation3 [shape = 's32[1]{0}', space=sflag, size = 0x4, scoped, tag = 'scoped memory for tpu_custom_call.1']
    #allocation4 [shape = 's32[1]{0}', space=sflag, size = 0x4, scoped, tag = 'scoped memory for tpu_custom_call.1']
    #allocation5 [shape = 'u8[65536]{0}', space=vmem, size = 0x10000, scoped, tag = 'input window, operand 1, single buffered']
    #allocation6 [shape = 's32[1]{0}', space=sflag, size = 0x4, scoped, tag = 'scoped memory for tpu_custom_call.1']
    #allocation7 [shape = 'u8[1024]{0}', space=vmem, size = 0x400, scoped, tag = 'output window, operand 0, single buffered']
    %8 = vsyncpa [#allocation3], 0
    %9 = vsyncpa [#allocation6], 0
    %10 = vsyncpa [#allocation4], 0
    // Predicated region
    $region2: #{tpu_custom_call.1} parent=1 // pred_check
      _
    $region3: #{tpu_custom_call.1} parent=1 // pred_check_branch
      %12 = sbr.rel (0) target = $region5
    $region4: #{tpu_custom_call.1} parent=1 // pred_region
      %s14 = ssub.s32 32, 32
      %15 = vsyncadd [#allocation3], %s14
      %s17 = sshll.u32 [#allocation2], 4
      %s18 = int_to_ptr.vmem [resolvable:$true] %s17
      %20 = dma.hbm_to_vmem [thread:$0]  %s0, 32, %s18, [#allocation3]
    $region5: #{tpu_custom_call.1} parent=1 // pred_fallthru
      _
    // Predicated region
    $region6: #{tpu_custom_call.1} parent=1 // pred_check
      _
    $region7: #{tpu_custom_call.1} parent=1 // pred_check_branch
      %22 = sbr.rel (0) target = $region9
    $region8: #{tpu_custom_call.1} parent=1 // pred_region
      %s24 = ssub.s32 2048, 2048
      %25 = vsyncadd [#allocation6], %s24
      %s26 = sshll.u32 [#allocation5], 4
      %s27 = int_to_ptr.vmem [resolvable:$true] %s26
      %32 = dma.hbm_to_vmem [thread:$0]  %s1, 2048, %s27, [#allocation6], 128, 128, 8
    $region9: #{tpu_custom_call.1} parent=1 // pred_fallthru
      _
    // Predicated region
    $region10: #{tpu_custom_call.1} parent=1 // pred_check
      _
    $region11: #{tpu_custom_call.1} parent=1 // pred_check_branch
      %34 = sbr.rel (0) target = $region13
    $region12: #{tpu_custom_call.1} parent=1 // pred_region
      _
    $region13: #{tpu_custom_call.1} parent=1 // pred_fallthru
      _
    // Predicated region
    $region14: #{tpu_custom_call.1} parent=1 // pred_check
      _
    $region15: #{tpu_custom_call.1} parent=1 // pred_check_branch
      %36 = sbr.rel (0) target = $region17
    $region16: #{tpu_custom_call.1} parent=1 // pred_region
      %37 = dma.done [#allocation3], 32
    $region17: #{tpu_custom_call.1} parent=1 // pred_fallthru
      _
    // Predicated region
    $region18: #{tpu_custom_call.1} parent=1 // pred_check
      _
    $region19: #{tpu_custom_call.1} parent=1 // pred_check_branch
      %39 = sbr.rel (0) target = $region21
    $region20: #{tpu_custom_call.1} parent=1 // pred_region
      %40 = dma.done [#allocation6], 2048
    $region21: #{tpu_custom_call.1} parent=1 // pred_fallthru
      _
    %v42 = vld [vmem:[#allocation2] sm:$0x3]
    %v43 = vpack.c.bf16 %v42, %v42
    %v44 = vld [vmem:[#allocation5] sm:$0xff]
    %v45 = vld [vmem:[#allocation5 + $0x8] sm:$0xff]
    %v46 = vld [vmem:[#allocation5 + $0x10] sm:$0xff]
    %v47 = vld [vmem:[#allocation5 + $0x18] sm:$0xff]
    %v48 = vld [vmem:[#allocation5 + $0x20] sm:$0xff]
    %v49 = vld [vmem:[#allocation5 + $0x28] sm:$0xff]
    %v50 = vld [vmem:[#allocation5 + $0x30] sm:$0xff]
    %v51 = vld [vmem:[#allocation5 + $0x38] sm:$0xff]
    %v52 = vld [vmem:[#allocation5 + $0x40] sm:$0xff]
    %v53 = vld [vmem:[#allocation5 + $0x48] sm:$0xff]
    %v54 = vld [vmem:[#allocation5 + $0x50] sm:$0xff]
    %v55 = vld [vmem:[#allocation5 + $0x58] sm:$0xff]
    %v56 = vld [vmem:[#allocation5 + $0x60] sm:$0xff]
    %v57 = vld [vmem:[#allocation5 + $0x68] sm:$0xff]
    %v58 = vld [vmem:[#allocation5 + $0x70] sm:$0xff]
    %v59 = vld [vmem:[#allocation5 + $0x78] sm:$0xff]
    %v60 = vpack.c.bf16 %v45, %v44
    %v61 = vpack.c.bf16 %v47, %v46
    %v62 = vpack.c.bf16 %v49, %v48
    %v63 = vpack.c.bf16 %v51, %v50
    %v64 = vpack.c.bf16 %v53, %v52
    %v65 = vpack.c.bf16 %v55, %v54
    %v66 = vpack.c.bf16 %v57, %v56
    %v67 = vpack.c.bf16 %v59, %v58
    %v68 = vld [vmem:[%s2] sm:$0x1]
    %v70 = vlaneseq
    %v71 = vshrl.u32 %v70, 7
    %v72 = vsub.s32 0, %v71
    %v73 = vrot.slane %v68, %v72
    %75 = vmatprep.subr.bf16.mxu0 0
    %76 = vmatpush1.bf16.xpose.msra.mxu0 %v60
    %77 = vmatprep.subr.bf16.mxu0 0
    %78 = vmatpush1.bf16.xpose.msra.mxu0 %v61
    %79 = vmatprep.subr.bf16.mxu0 0
    %80 = vmatpush1.bf16.xpose.msra.mxu0 %v62
    %81 = vmatprep.subr.bf16.mxu0 0
    %82 = vmatpush1.bf16.xpose.msra.mxu0 %v63
    %83 = vmatprep.subr.bf16.mxu0 0
    %84 = vmatpush1.bf16.xpose.msra.mxu0 %v64
    %85 = vmatprep.subr.bf16.mxu0 0
    %86 = vmatpush1.bf16.xpose.msra.mxu0 %v65
    %87 = vmatprep.subr.bf16.mxu0 0
    %88 = vmatpush1.bf16.xpose.msra.mxu0 %v66
    %89 = vmatprep.subr.bf16.mxu0 0
    %90 = vmatpush1.bf16.xpose.msra.mxu0 %v67
    %91 = vmatprep.subr.bf16.mxu0 0
    %92 = vmatpush1.bf16.xpose.msra.mxu0 0
    %93 = vmatprep.subr.bf16.mxu0 0
    %94 = vmatpush1.bf16.xpose.msra.mxu0 0
    %95 = vmatprep.subr.bf16.mxu0 0
    %96 = vmatpush1.bf16.xpose.msra.mxu0 0
    %97 = vmatprep.subr.bf16.mxu0 0
    %98 = vmatpush1.bf16.xpose.msra.mxu0 0
    %99 = vmatprep.subr.bf16.mxu0 0
    %100 = vmatpush1.bf16.xpose.msra.mxu0 0
    %101 = vmatprep.subr.bf16.mxu0 0
    %102 = vmatpush1.bf16.xpose.msra.mxu0 0
    %103 = vmatprep.subr.bf16.mxu0 0
    %104 = vmatpush1.bf16.xpose.msra.mxu0 0
    %105 = vmatprep.subr.bf16.mxu0 0
    %106 = vmatpush1.bf16.xpose.msra.mxu0 0
    %107 = vmatprep.mubr.bf16.mxu0 0
    %108 = vmatmul.mubr.bf16.gmra.mrb[0].mxu0 %v43
    %v109 = vpop.f32.mrb[0].mxu0
    %v110 = vadd.f32 %v73, %v109
    %v111 = vpop.f32.mrb[0].mxu0
    %v112 = vpop.f32.mrb[0].mxu0
    %v113 = vpop.f32.mrb[0].mxu0
    %114 = vdwg.mxu0
    %115 = vst [vmem:[#allocation7] sm:$0x3] %v110
    // Predicated region
    $region22: #{tpu_custom_call.1} parent=1 // pred_check
      _
    $region23: #{tpu_custom_call.1} parent=1 // pred_check_branch
      %117 = sbr.rel (0) target = $region25
    $region24: #{tpu_custom_call.1} parent=1 // pred_region
      %s119 = ssub.s32 32, 32
      %120 = vsyncadd [#allocation4], %s119
      %s122 = sshll.u32 [#allocation7], 4
      %s123 = int_to_ptr.vmem [resolvable:$true] %s122
      %125 = dma.vmem_to_hbm [thread:$0]  %s123, 32, %s3, [#allocation4]
    $region25: #{tpu_custom_call.1} parent=1 // pred_fallthru
      _
    // Predicated region
    $region26: #{tpu_custom_call.1} parent=1 // pred_check
      _
    $region27: #{tpu_custom_call.1} parent=1 // pred_check_branch
      %127 = sbr.rel (0) target = $region29
    $region28: #{tpu_custom_call.1} parent=1 // pred_region
      %128 = dma.done [#allocation4], 32
    $region29: #{tpu_custom_call.1} parent=1 // pred_fallthru
      _
    %129 = vsyncpa [#allocation3], 1
    %130 = vsyncpa [#allocation6], 1
    %131 = vsyncpa [#allocation4], 1

</llo_original>
